<compile_context>
chip_gen: v7x
topology: tpu7x:2x2x1
jax: 0.10.0
libtpu: 0.0.40
codegen_flags: <defaults>
</compile_context>

<pallas_src>
import jax
import jax.numpy as jnp
from jax import lax
from jax.experimental import pallas as pl
from jax.experimental.pallas import tpu as pltpu


def _physical_vmem_bytes():
    """Physical VMEM of the local TPU generation (falls back to v7x's 64 MiB)."""
    try:
        return int(pltpu.get_tpu_info().vmem_capacity_bytes)
    except Exception:
        return 64 * 1024 * 1024


# ----------------------------------------------------------------------------
# Kernel factory
# ----------------------------------------------------------------------------
def _make_kernel(BB, Cin, Cout, KH, KW, Wrow, S_blk, pad, use_mask, mx_dtype):
    """One grid step: BB images x one output row-block.

    refs:
      xb_ref : (BB, 1, Cin, LBLK)   flattened input rows incl. (KH-1)-row + 2*pad halo
      wdw_ref: (KH*KW, Cin, 1)      depthwise weights, one (Cin,1) column per tap
      wpw_ref: (Cout, Cin)          pointwise weights
      o_ref  : (BB, Cout, S_blk)    lane-dense output rows
      acc_ref: (Cin, BB*S_blk) f32  VMEM scratch (present only when BB > 1)
    """
    n_taps = KH * KW

    def depthwise(xb_ref, b, wtap, masks):
        # kw-outer / kh-inner: the lateral-validity mask is applied once per kw group,
        # not per tap (saves (KH-1)*(KW-1) VALU muls per element).
        acc = None
        for kw in range(KW):
            part = None
            for kh in range(KH):
                start = kh * Wrow + kw            # static -> folds into vld addressing
                tap = xb_ref[b, 0, :, start:start + S_blk].astype(jnp.float32)
                term = tap * wtap[kh * KW + kw]
                part = term if part is None else part + term
            if use_mask and kw != pad:
                part = jnp.where(masks[kw], part, 0.0)
            acc = part if acc is None else acc + part
        return acc                                 # (Cin, S_blk) f32

    def kernel(xb_ref, wdw_ref, wpw_ref, o_ref, *scratch):
        # hoist tiny loads / mask generation out of the unrolled loops
        wtap = [wdw_ref[k].astype(jnp.float32) for k in range(n_taps)]   # (Cin,1) each
        wpw = wpw_ref[...]
        if wpw.dtype != mx_dtype:
            wpw = wpw.astype(mx_dtype)

        masks = None
        if use_mask:
            # in-kernel column-validity masks (row blocks start on row boundaries)
            lane = lax.broadcasted_iota(jnp.int32, (1, S_blk), 1)
            col = lane % Wrow
            masks = {
                kw: jnp.logical_and(col + (kw - pad) >= 0, col + (kw - pad) < Wrow)
                for kw in range(KW) if kw != pad
            }

        if BB == 1:
            acc = depthwise(xb_ref, 0, wtap, masks)
            out = jnp.dot(wpw, acc.astype(mx_dtype),
                          preferred_element_type=jnp.float32)            # (Cout, S_blk)
            o_ref[0] = out.astype(o_ref.dtype)
        else:
            # stage every image's depthwise result in VMEM (bounds vreg live ranges),
            # then issue one wide-N pointwise matmul for the whole step.
            acc_ref, = scratch
            for b in range(BB):
                acc_ref[:, b * S_blk:(b + 1) * S_blk] = depthwise(xb_ref, b, wtap, masks)
            out = jnp.dot(wpw, acc_ref[...].astype(mx_dtype),
                          preferred_element_type=jnp.float32)            # (Cout, BB*S_blk)
            for b in range(BB):
                o_ref[b] = out[:, b * S_blk:(b + 1) * S_blk].astype(o_ref.dtype)

    return kernel


# ----------------------------------------------------------------------------
# Block sizing (per-generation VMEM budget, >= 2 grid steps when possible)
# ----------------------------------------------------------------------------
def _choose_blocks(B, Cin, Cout, Ho, Wrow, HALO, itemsize, budget):
    def per_img_bytes(rb):
        s = rb * Wrow
        lblk = s + HALO
        # double-buffered in/out blocks + f32 depthwise acc + f32 matmul result
        return (2 * lblk * Cin + 2 * s * Cout) * itemsize + s * (Cin + Cout) * 4

    divisors = [d for d in range(Ho, 0, -1) if Ho % d == 0]
    # a sub-image row block needs a 128-divisible lane width for the blocked output
    legal = [d for d in divisors if d == Ho or (d * Wrow) % 128 == 0]
    fit = [d for d in legal if per_img_bytes(d) <= budget]
    if fit:
        rb = fit[0]
        if B < 2:
            split = [d for d in fit if d < Ho]     # no batch steps: split rows (2 TCs)
            if split:
                rb = split[0]
    else:
        # TODO(synk): pad rows up to a 128-divisible width so odd widths can still be
        #             row-blocked instead of falling back to whole-image blocks.
        smaller = [d for d in legal if d < Ho]
        rb = min(smaller) if smaller else Ho

    nR = Ho // rb
    if nR > 1:
        BB = 1
    else:
        BB = min(B, max(1, budget // max(per_img_bytes(rb), 1)))
        if B >= 2:
            BB = min(BB, B // 2)                   # >= 2 grid steps for v7x's 2 TCs
        BB = max(1, min(BB, 8))                    # keep per-step unroll / scratch modest
        while B % BB:
            BB -= 1
    return rb, nR, BB


# ----------------------------------------------------------------------------
# Public entry point (matches the PyTorch module: depthwise then pointwise, no bias)
# ----------------------------------------------------------------------------
def depthwise_separable_conv(x, dw_weight, pw_weight, padding, *, max_block_bytes=None):
    """x: (B, Cin, H, W); dw_weight: (Cin, 1, KH, KW); pw_weight: (Cout, Cin, 1, 1)."""
    B, Cin, H, W = map(int, x.shape)
    KH, KW = int(dw_weight.shape[2]), int(dw_weight.shape[3])
    Cout = int(pw_weight.shape[0])
    pad = int(padding)
    Ho = H + 2 * pad - KH + 1
    Wo = W + 2 * pad - KW + 1
    if Ho < 1 or Wo < 1:
        raise ValueError("depthwise output would be empty")

    itemsize = x.dtype.itemsize
    same_width = (2 * pad == KW - 1)               # => Wo == W: no junk columns

    if same_width:
        Wrow = W
        xflat = jnp.reshape(x, (B, Cin, H * W))
        front = pad * W + pad                      # top halo rows + lateral spill
    else:
        # general config: compute over the spatially padded grid (rows of width W+2p)
        Wrow = W + 2 * pad
        xp = jnp.pad(x, ((0, 0), (0, 0), (pad, pad), (pad, pad)))
        xflat = jnp.reshape(xp, (B, Cin, (H + 2 * pad) * Wrow))
        front = 0

    Sfull = Ho * Wrow                              # flat computed-output length / image
    HALO = (KH - 1) * Wrow + (KW - 1)              # extra input needed past a row block
    Lneed = Sfull + HALO
    back = Lneed - front - int(xflat.shape[2])
    xfpad = jnp.pad(xflat, ((0, 0), (0, 0), (front, back)))   # (B, Cin, Lneed)

    vmem_phys = _physical_vmem_bytes()
    budget = int(max_block_bytes) if max_block_bytes else vmem_phys // 4
    Rb, nR, BB = _choose_blocks(B, Cin, Cout, Ho, Wrow, HALO, itemsize, budget)
    S_blk = Rb * Wrow
    LBLK = S_blk + HALO

    # Bake the row halo into a blocked view of the (already copied) padded input so
    # plain Blocked BlockSpecs pipeline the overlapping row windows.
    if nR == 1:
        xb = xfpad[:, None, :, :]                  # free reshape
    else:
        xb = jnp.stack(
            [xfpad[:, :, r * S_blk:r * S_blk + LBLK] for r in range(nR)], axis=1)

    # tiny weight re-layouts (once, outside the hot path)
    wdw = jnp.transpose(dw_weight[:, 0, :, :], (1, 2, 0)).reshape(KH * KW, Cin, 1)
    wpw = pw_weight[:, :, 0, 0]                    # (Cout, Cin)

    mx_dtype = jnp.bfloat16 if x.dtype == jnp.bfloat16 else jnp.float32
    kernel = _make_kernel(BB, Cin, Cout, KH, KW, Wrow, S_blk, pad, same_width, mx_dtype)
    scratch = [pltpu.VMEM((Cin, BB * S_blk), jnp.float32)] if BB > 1 else []

    out = pl.pallas_call(
        kernel,
        out_shape=jax.ShapeDtypeStruct((B, Cout, Sfull), x.dtype),
        grid_spec=pltpu.PrefetchScalarGridSpec(
            num_scalar_prefetch=0,
            grid=(B // BB, nR),
            in_specs=[
                pl.BlockSpec((BB, 1, Cin, LBLK), lambda bi, ri: (bi, ri, 0, 0)),
                pl.BlockSpec((KH * KW, Cin, 1), lambda bi, ri: (0, 0, 0)),
                pl.BlockSpec((Cout, Cin), lambda bi, ri: (0, 0)),
            ],
            out_specs=pl.BlockSpec((BB, Cout, S_blk), lambda bi, ri: (bi, 0, ri)),
            scratch_shapes=scratch,
        ),
        compiler_params=pltpu.CompilerParams(
            dimension_semantics=("parallel", "parallel"),
            vmem_limit_bytes=min(int(vmem_phys * 0.9), 112 * 1024 * 1024),
        ),
    )(xb, wdw, wpw)

    out = jnp.reshape(out, (B, Cout, Ho, Wrow))    # channel-major: free reshape to NCHW
    if not same_width:
        out = out[:, :, :, :Wo]                    # drop the KW-1 junk columns per row
    return out


# ----------------------------------------------------------------------------
# Pure-JAX reference and self-test
# ----------------------------------------------------------------------------
def _reference(x, dw_weight, pw_weight, padding):
    dw = lax.conv_general_dilated(
        x, dw_weight, window_strides=(1, 1),
        padding=((padding, padding), (padding, padding)),
        dimension_numbers=("NCHW", "OIHW", "NCHW"),
        feature_group_count=x.shape[1])
    return lax.conv_general_dilated(
        dw, pw_weight, window_strides=(1, 1), padding="VALID",
        dimension_numbers=("NCHW", "OIHW", "NCHW"))


if __name__ == "__main__":
    root = jax.random.PRNGKey(0)

    def run_case(idx, B, Cin, Cout, H, W, ksize, pad, max_block_bytes=None):
        k1, k2, k3 = jax.random.split(jax.random.fold_in(root, idx), 3)
        x = jax.random.normal(k1, (B, Cin, H, W), dtype=jnp.float32)
        dw = jax.random.normal(k2, (Cin, 1, ksize, ksize), dtype=jnp.float32) * 0.1
        pw = jax.random.normal(k3, (Cout, Cin, 1, 1), dtype=jnp.float32) * 0.1
        out = jax.block_until_ready(
            depthwise_separable_conv(x, dw, pw, pad, max_block_bytes=max_block_bytes))
        ref = jax.block_until_ready(_reference(x, dw, pw, pad))
        assert out.shape == ref.shape, (idx, out.shape, ref.shape)
        if not jnp.allclose(out, ref, atol=2e-4, rtol=2e-4):
            raise AssertionError("mismatch in case %d" % idx)

    # module's standard config: 3x3 depthwise ("same" padding) + 1x1 pointwise
    run_case(0, 2, 4, 8, 16, 16, 3, 1)
    # row-blocked path with halo (small block budget -> 2 row blocks of 8 rows)
    run_case(1, 2, 4, 8, 16, 16, 3, 1, max_block_bytes=32 * 1024)
    # batch-fused path (BB > 1): single wide-N pointwise matmul per grid step
    run_case(2, 4, 4, 8, 16, 16, 3, 1)
    # 5x5 "same" config and a non-"same" config (padded-grid scheme)
    run_case(3, 2, 4, 8, 16, 16, 5, 2)
    run_case(4, 2, 4, 8, 16, 16, 3, 0)
    print("KERNEL_OK")
</pallas_src>

<mosaic_0001>
module attributes {stable_mosaic.version = 11 : i64} {
  func.func @kernel(%arg0: i32, %arg1: i32, %arg2: memref<1x1x4x290xf32, #tpu.memory_space<vmem>>, %arg3: memref<9x4x1xf32, #tpu.memory_space<vmem>>, %arg4: memref<8x4xf32, #tpu.memory_space<vmem>>, %arg5: memref<1x8x256xf32, #tpu.memory_space<vmem>>) attributes {dimension_semantics = [#tpu.dimension_semantics<parallel>, #tpu.dimension_semantics<parallel>], iteration_bounds = array<i64: 2, 1>, scalar_prefetch = 0 : i64, scratch_operands = 0 : i64, tpu.core_type = #tpu.core_type<tc>, window_params = [{transform_indices = @transform_0, window_bounds = array<i64: 1, 1, 4, 290>}, {pipeline_mode = #tpu.pipeline_mode<synchronous>, transform_indices = @transform_1, window_bounds = array<i64: 9, 4, 1>}, {pipeline_mode = #tpu.pipeline_mode<synchronous>, transform_indices = @transform_2, window_bounds = array<i64: 8, 4>}, {transform_indices = @transform_3, window_bounds = array<i64: 1, 8, 256>}]} {
    %c0 = arith.constant 0 : index
    %c0_0 = arith.constant 0 : index
    %c0_1 = arith.constant 0 : index
    %0 = vector.load %arg3[%c0, %c0_0, %c0_1] : memref<9x4x1xf32, #tpu.memory_space<vmem>>, vector<1x4x1xf32>
    %1 = vector.shape_cast %0 : vector<1x4x1xf32> to vector<4x1xf32>
    %c1 = arith.constant 1 : index
    %c0_2 = arith.constant 0 : index
    %c0_3 = arith.constant 0 : index
    %2 = vector.load %arg3[%c1, %c0_2, %c0_3] : memref<9x4x1xf32, #tpu.memory_space<vmem>>, vector<1x4x1xf32>
    %3 = vector.shape_cast %2 : vector<1x4x1xf32> to vector<4x1xf32>
    %c2 = arith.constant 2 : index
    %c0_4 = arith.constant 0 : index
    %c0_5 = arith.constant 0 : index
    %4 = vector.load %arg3[%c2, %c0_4, %c0_5] : memref<9x4x1xf32, #tpu.memory_space<vmem>>, vector<1x4x1xf32>
    %5 = vector.shape_cast %4 : vector<1x4x1xf32> to vector<4x1xf32>
    %c3 = arith.constant 3 : index
    %c0_6 = arith.constant 0 : index
    %c0_7 = arith.constant 0 : index
    %6 = vector.load %arg3[%c3, %c0_6, %c0_7] : memref<9x4x1xf32, #tpu.memory_space<vmem>>, vector<1x4x1xf32>
    %7 = vector.shape_cast %6 : vector<1x4x1xf32> to vector<4x1xf32>
    %c4 = arith.constant 4 : index
    %c0_8 = arith.constant 0 : index
    %c0_9 = arith.constant 0 : index
    %8 = vector.load %arg3[%c4, %c0_8, %c0_9] : memref<9x4x1xf32, #tpu.memory_space<vmem>>, vector<1x4x1xf32>
    %9 = vector.shape_cast %8 : vector<1x4x1xf32> to vector<4x1xf32>
    %c5 = arith.constant 5 : index
    %c0_10 = arith.constant 0 : index
    %c0_11 = arith.constant 0 : index
    %10 = vector.load %arg3[%c5, %c0_10, %c0_11] : memref<9x4x1xf32, #tpu.memory_space<vmem>>, vector<1x4x1xf32>
    %11 = vector.shape_cast %10 : vector<1x4x1xf32> to vector<4x1xf32>
    %c6 = arith.constant 6 : index
    %c0_12 = arith.constant 0 : index
    %c0_13 = arith.constant 0 : index
    %12 = vector.load %arg3[%c6, %c0_12, %c0_13] : memref<9x4x1xf32, #tpu.memory_space<vmem>>, vector<1x4x1xf32>
    %13 = vector.shape_cast %12 : vector<1x4x1xf32> to vector<4x1xf32>
    %c7 = arith.constant 7 : index
    %c0_14 = arith.constant 0 : index
    %c0_15 = arith.constant 0 : index
    %14 = vector.load %arg3[%c7, %c0_14, %c0_15] : memref<9x4x1xf32, #tpu.memory_space<vmem>>, vector<1x4x1xf32>
    %15 = vector.shape_cast %14 : vector<1x4x1xf32> to vector<4x1xf32>
    %c8 = arith.constant 8 : index
    %c0_16 = arith.constant 0 : index
    %c0_17 = arith.constant 0 : index
    %16 = vector.load %arg3[%c8, %c0_16, %c0_17] : memref<9x4x1xf32, #tpu.memory_space<vmem>>, vector<1x4x1xf32>
    %17 = vector.shape_cast %16 : vector<1x4x1xf32> to vector<4x1xf32>
    %c0_18 = arith.constant 0 : index
    %c0_19 = arith.constant 0 : index
    %18 = vector.load %arg4[%c0_18, %c0_19] : memref<8x4xf32, #tpu.memory_space<vmem>>, vector<8x4xf32>
    %19 = tpu.iota {dimensions = array<i32: 1>} : vector<1x256xi32>
    %c16_i32 = arith.constant 16 : i32
    %c0_i32 = arith.constant 0 : i32
    %20 = arith.cmpi eq, %c16_i32, %c0_i32 : i32
    %c1_i32 = arith.constant 1 : i32
    %21 = arith.select %20, %c1_i32, %c16_i32 : i32
    %22 = vector.broadcast %21 : i32 to vector<1x256xi32>
    %23 = arith.remsi %19, %22 : vector<1x256xi32>
    %c0_i32_20 = arith.constant 0 : i32
    %24 = vector.broadcast %c0_i32_20 : i32 to vector<1x256xi32>
    %25 = arith.cmpi ne, %23, %24 : vector<1x256xi32>
    %c0_i32_21 = arith.constant 0 : i32
    %26 = vector.broadcast %c0_i32_21 : i32 to vector<1x256xi32>
    %27 = arith.cmpi slt, %23, %26 : vector<1x256xi32>
    %c0_i32_22 = arith.constant 0 : i32
    %28 = arith.cmpi slt, %21, %c0_i32_22 : i32
    %29 = vector.broadcast %28 : i1 to vector<1x256xi1>
    %30 = vector.broadcast %29 : vector<1x256xi1> to vector<1x256xi1>
    %31 = arith.xori %27, %30 : vector<1x256xi1>
    %32 = arith.andi %31, %25 : vector<1x256xi1>
    %33 = vector.broadcast %21 : i32 to vector<1x256xi32>
    %34 = arith.addi %23, %33 : vector<1x256xi32>
    %35 = arith.select %32, %34, %23 : vector<1x256xi1>, vector<1x256xi32>
    %c-1_i32 = arith.constant -1 : i32
    %36 = vector.broadcast %c-1_i32 : i32 to vector<1x256xi32>
    %37 = arith.addi %35, %36 : vector<1x256xi32>
    %c0_i32_23 = arith.constant 0 : i32
    %38 = vector.broadcast %c0_i32_23 : i32 to vector<1x256xi32>
    %39 = arith.cmpi sge, %37, %38 : vector<1x256xi32>
    %c-1_i32_24 = arith.constant -1 : i32
    %40 = vector.broadcast %c-1_i32_24 : i32 to vector<1x256xi32>
    %41 = arith.addi %35, %40 : vector<1x256xi32>
    %c16_i32_25 = arith.constant 16 : i32
    %42 = vector.broadcast %c16_i32_25 : i32 to vector<1x256xi32>
    %43 = arith.cmpi slt, %41, %42 : vector<1x256xi32>
    %44 = arith.andi %39, %43 : vector<1x256xi1>
    %c1_i32_26 = arith.constant 1 : i32
    %45 = vector.broadcast %c1_i32_26 : i32 to vector<1x256xi32>
    %46 = arith.addi %35, %45 : vector<1x256xi32>
    %c0_i32_27 = arith.constant 0 : i32
    %47 = vector.broadcast %c0_i32_27 : i32 to vector<1x256xi32>
    %48 = arith.cmpi sge, %46, %47 : vector<1x256xi32>
    %c1_i32_28 = arith.constant 1 : i32
    %49 = vector.broadcast %c1_i32_28 : i32 to vector<1x256xi32>
    %50 = arith.addi %35, %49 : vector<1x256xi32>
    %c16_i32_29 = arith.constant 16 : i32
    %51 = vector.broadcast %c16_i32_29 : i32 to vector<1x256xi32>
    %52 = arith.cmpi slt, %50, %51 : vector<1x256xi32>
    %53 = arith.andi %48, %52 : vector<1x256xi1>
    %c0_30 = arith.constant 0 : index
    %c0_31 = arith.constant 0 : index
    %c0_32 = arith.constant 0 : index
    %c0_33 = arith.constant 0 : index
    %54 = vector.load %arg2[%c0_30, %c0_31, %c0_32, %c0_33] : memref<1x1x4x290xf32, #tpu.memory_space<vmem>>, vector<1x1x4x256xf32>
    %55 = vector.shape_cast %54 : vector<1x1x4x256xf32> to vector<4x256xf32>
    %56 = vector.broadcast %1 : vector<4x1xf32> to vector<4x256xf32>
    %57 = arith.mulf %55, %56 : vector<4x256xf32>
    %c0_34 = arith.constant 0 : index
    %c0_35 = arith.constant 0 : index
    %c0_36 = arith.constant 0 : index
    %c16 = arith.constant 16 : index
    %58 = vector.load %arg2[%c0_34, %c0_35, %c0_36, %c16] : memref<1x1x4x290xf32, #tpu.memory_space<vmem>>, vector<1x1x4x256xf32>
    %59 = vector.shape_cast %58 : vector<1x1x4x256xf32> to vector<4x256xf32>
    %60 = vector.broadcast %7 : vector<4x1xf32> to vector<4x256xf32>
    %61 = arith.mulf %59, %60 : vector<4x256xf32>
    %62 = arith.addf %57, %61 : vector<4x256xf32>
    %c0_37 = arith.constant 0 : index
    %c0_38 = arith.constant 0 : index
    %c0_39 = arith.constant 0 : index
    %c32 = arith.constant 32 : index
    %63 = vector.load %arg2[%c0_37, %c0_38, %c0_39, %c32] : memref<1x1x4x290xf32, #tpu.memory_space<vmem>>, vector<1x1x4x256xf32>
    %64 = vector.shape_cast %63 : vector<1x1x4x256xf32> to vector<4x256xf32>
    %65 = vector.broadcast %13 : vector<4x1xf32> to vector<4x256xf32>
    %66 = arith.mulf %64, %65 : vector<4x256xf32>
    %67 = arith.addf %62, %66 : vector<4x256xf32>
    %cst = arith.constant 0.000000e+00 : f32
    %68 = vector.shape_cast %44 : vector<1x256xi1> to vector<1x256xi1>
    %69 = vector.broadcast %68 : vector<1x256xi1> to vector<4x256xi1>
    %70 = vector.broadcast %cst : f32 to vector<4x256xf32>
    %71 = arith.select %69, %67, %70 : vector<4x256xi1>, vector<4x256xf32>
    %c0_40 = arith.constant 0 : index
    %c0_41 = arith.constant 0 : index
    %c0_42 = arith.constant 0 : index
    %c1_43 = arith.constant 1 : index
    %72 = vector.load %arg2[%c0_40, %c0_41, %c0_42, %c1_43] : memref<1x1x4x290xf32, #tpu.memory_space<vmem>>, vector<1x1x4x256xf32>
    %73 = vector.shape_cast %72 : vector<1x1x4x256xf32> to vector<4x256xf32>
    %74 = vector.broadcast %3 : vector<4x1xf32> to vector<4x256xf32>
    %75 = arith.mulf %73, %74 : vector<4x256xf32>
    %c0_44 = arith.constant 0 : index
    %c0_45 = arith.constant 0 : index
    %c0_46 = arith.constant 0 : index
    %c17 = arith.constant 17 : index
    %76 = vector.load %arg2[%c0_44, %c0_45, %c0_46, %c17] : memref<1x1x4x290xf32, #tpu.memory_space<vmem>>, vector<1x1x4x256xf32>
    %77 = vector.shape_cast %76 : vector<1x1x4x256xf32> to vector<4x256xf32>
    %78 = vector.broadcast %9 : vector<4x1xf32> to vector<4x256xf32>
    %79 = arith.mulf %77, %78 : vector<4x256xf32>
    %80 = arith.addf %75, %79 : vector<4x256xf32>
    %c0_47 = arith.constant 0 : index
    %c0_48 = arith.constant 0 : index
    %c0_49 = arith.constant 0 : index
    %c33 = arith.constant 33 : index
    %81 = vector.load %arg2[%c0_47, %c0_48, %c0_49, %c33] : memref<1x1x4x290xf32, #tpu.memory_space<vmem>>, vector<1x1x4x256xf32>
    %82 = vector.shape_cast %81 : vector<1x1x4x256xf32> to vector<4x256xf32>
    %83 = vector.broadcast %15 : vector<4x1xf32> to vector<4x256xf32>
    %84 = arith.mulf %82, %83 : vector<4x256xf32>
    %85 = arith.addf %80, %84 : vector<4x256xf32>
    %86 = arith.addf %71, %85 : vector<4x256xf32>
    %c0_50 = arith.constant 0 : index
    %c0_51 = arith.constant 0 : index
    %c0_52 = arith.constant 0 : index
    %c2_53 = arith.constant 2 : index
    %87 = vector.load %arg2[%c0_50, %c0_51, %c0_52, %c2_53] : memref<1x1x4x290xf32, #tpu.memory_space<vmem>>, vector<1x1x4x256xf32>
    %88 = vector.shape_cast %87 : vector<1x1x4x256xf32> to vector<4x256xf32>
    %89 = vector.broadcast %5 : vector<4x1xf32> to vector<4x256xf32>
    %90 = arith.mulf %88, %89 : vector<4x256xf32>
    %c0_54 = arith.constant 0 : index
    %c0_55 = arith.constant 0 : index
    %c0_56 = arith.constant 0 : index
    %c18 = arith.constant 18 : index
    %91 = vector.load %arg2[%c0_54, %c0_55, %c0_56, %c18] : memref<1x1x4x290xf32, #tpu.memory_space<vmem>>, vector<1x1x4x256xf32>
    %92 = vector.shape_cast %91 : vector<1x1x4x256xf32> to vector<4x256xf32>
    %93 = vector.broadcast %11 : vector<4x1xf32> to vector<4x256xf32>
    %94 = arith.mulf %92, %93 : vector<4x256xf32>
    %95 = arith.addf %90, %94 : vector<4x256xf32>
    %c0_57 = arith.constant 0 : index
    %c0_58 = arith.constant 0 : index
    %c0_59 = arith.constant 0 : index
    %c34 = arith.constant 34 : index
    %96 = vector.load %arg2[%c0_57, %c0_58, %c0_59, %c34] : memref<1x1x4x290xf32, #tpu.memory_space<vmem>>, vector<1x1x4x256xf32>
    %97 = vector.shape_cast %96 : vector<1x1x4x256xf32> to vector<4x256xf32>
    %98 = vector.broadcast %17 : vector<4x1xf32> to vector<4x256xf32>
    %99 = arith.mulf %97, %98 : vector<4x256xf32>
    %100 = arith.addf %95, %99 : vector<4x256xf32>
    %cst_60 = arith.constant 0.000000e+00 : f32
    %101 = vector.shape_cast %53 : vector<1x256xi1> to vector<1x256xi1>
    %102 = vector.broadcast %101 : vector<1x256xi1> to vector<4x256xi1>
    %103 = vector.broadcast %cst_60 : f32 to vector<4x256xf32>
    %104 = arith.select %102, %100, %103 : vector<4x256xi1>, vector<4x256xf32>
    %105 = arith.addf %86, %104 : vector<4x256xf32>
    %cst_61 = arith.constant dense<0.000000e+00> : vector<8x256xf32>
    %106 = tpu.matmul %18, %105, %cst_61 {dimension_numbers = #tpu.dot_dimension_numbers<[1], [0], [0], [1], [0, 0, 1, 1], [], []>} : vector<8x4xf32>, vector<4x256xf32>, vector<8x256xf32> -> vector<8x256xf32>
    %c0_62 = arith.constant 0 : index
    %c0_63 = arith.constant 0 : index
    %c0_64 = arith.constant 0 : index
    %107 = vector.load %arg5[%c0_62, %c0_63, %c0_64] : memref<1x8x256xf32, #tpu.memory_space<vmem>>, vector<1x8x256xf32>
    %108 = vector.shape_cast %107 : vector<1x8x256xf32> to vector<8x256xf32>
    %109 = vector.shape_cast %106 : vector<8x256xf32> to vector<1x8x256xf32>
    tpu.vector_store %arg5[%c0_62, %c0_63, %c0_64], %109 {strides = array<i32>} : memref<1x8x256xf32, #tpu.memory_space<vmem>>, vector<1x8x256xf32>,
    return
  }
  func.func @transform_0(%arg0: i32, %arg1: i32) -> (i32, i32, i32, i32) {
    %c0_i32 = arith.constant 0 : i32
    %c0_i32_0 = arith.constant 0 : i32
    %c0_i32_1 = arith.constant 0 : i32
    return %arg0, %arg1, %c0_i32, %c0_i32_0 : i32, i32, i32, i32
  }
  func.func @transform_1(%arg0: i32, %arg1: i32) -> (i32, i32, i32) {
    %c0_i32 = arith.constant 0 : i32
    %c0_i32_0 = arith.constant 0 : i32
    %c0_i32_1 = arith.constant 0 : i32
    %c0_i32_2 = arith.constant 0 : i32
    return %c0_i32, %c0_i32_0, %c0_i32_1 : i32, i32, i32
  }
  func.func @transform_2(%arg0: i32, %arg1: i32) -> (i32, i32) {
    %c0_i32 = arith.constant 0 : i32
    %c0_i32_0 = arith.constant 0 : i32
    %c0_i32_1 = arith.constant 0 : i32
    return %c0_i32, %c0_i32_0 : i32, i32
  }
  func.func @transform_3(%arg0: i32, %arg1: i32) -> (i32, i32, i32) {
    %c0_i32 = arith.constant 0 : i32
    %c0_i32_0 = arith.constant 0 : i32
    return %arg0, %c0_i32, %arg1 : i32, i32, i32
  }
}

</mosaic_0001>

<llo_original>
// kernel: tpu_custom_call.1
$region0: #{tpu_custom_call.1}
  #allocation0 [shape = 'u32[]', space=smem, size = 0x4, offset = 0x4, fixed_abs, tag = 'smem constant byte address 0x4 - core index']
  #allocation1 [shape = 'u32[144,128]{1,0:T(1,128)}', space=vmem, size = 0x12000, scoped, tag = 'internal scratch']
  %s0 = inlined_call_operand.vmem [shape: f32[2,1,4,290], index: 0, kind: input, shape index: {}]
  %s1 = inlined_call_operand.vmem [shape: f32[9,4,1], index: 1, kind: input, shape index: {}]
  %s2 = inlined_call_operand.vmem [shape: f32[8,4], index: 2, kind: input, shape index: {}]
  %s3 = inlined_call_operand.hbm [shape: f32[2,8,256], index: 3, kind: output, shape index: {}]
  %s4 = sld [smem:[#allocation0]]
  $region45: #{tpu_custom_call.1} parent=0
    _
  %s6 = ssub.s32 1, %s4
  %s7 = scalar_select 0, %s6, %s4
  $region1: #{tpu_custom_call.1} parent=0
    #allocation2 [shape = 'u8[16384]{0}', space=vmem, size = 0x4000, scoped, tag = 'output window, operand 0']
    #allocation3 [shape = 's32[2]{0}', space=sflag, size = 0x8, scoped, tag = 'scoped memory for tpu_custom_call.1']
    %8 = vsyncpa [#allocation3], 0
    %s9 = scalar_lea.sflag [#allocation3], 1
    %10 = vsyncpa %s9, 0
    loop: start=0, step=1, limit=4
    $region2: #{tpu_custom_call.1} parent=1 // loop_pre_header
      _
    $region3: #{tpu_custom_call.1} parent=1 // loop_header
      %s12 = sphi 0, %s16
      %p13 = scmp.ge.s32.totalorder %s12, 4
      %s19 = sphi 0, %s31
      %s20 = sphi 0, %s27
      %s21 = sphi 0, %s19
      %s22 = sphi 0, %s20
      %s23 = sphi 0, %s21
      %s24 = sphi 0, %s22
      %s36 = sphi 0, %s38
      %s39 = sphi 0, %s36
      %s40 = sphi 0, %s39
      %s56 = sphi 0, %s40
      %s60 = sphi 0, %s60
      %s62 = sphi 0, %s60
      %s63 = sphi 0, %s62
      %s77 = sphi 0, %s63
      %s81 = sphi 0, %s81
      %s83 = sphi 0, %s81
      %s84 = sphi 0, %s83
      %s98 = sphi 0, %s84
      %s106 = sphi 0, %s108
      %s109 = sphi 0, %s106
      %s110 = sphi 0, %s109
      %s126 = sphi 0, %s110
    $region4: #{tpu_custom_call.1} parent=1 // loop_header_branch
      %15 = sbr.rel (%p13) target = $region8
    $region5: #{tpu_custom_call.1} parent=1 // loop_body
      %s17 = ssub.s32 %s12, 1
      %s18 = ssub.s32 %s12, 2
      %s25 = sadd.s32 1, %s20
      %p26 = scmp.ge.s32.totalorder %s25, 1
      %s27 = scalar_select %p26, 0, %s25
      %s28 = sadd.s32 1, %s19
      %s29 = scalar_select %p26, %s28, %s19
      %p30 = scmp.ge.s32.totalorder %s29, 2
      %s31 = scalar_select %p30, 0, %s29
      %s32 = ssub.s32 %s19, %s31
      %s33 = ssub.s32 %s20, %s27
      %s34 = sor.u32 %s32, %s33
      %p35 = scmp.eq.s32.totalorder %s34, 0
      %s37 = sadd.s32 %s36, 1
      %s38 = scalar_select %p35, %s36, %s37
      %p41 = pneg %p35
      %p42 = scmp.eq.s32.totalorder %s12, 1
      %p43 = por %p41, %p42
      %p44 = scmp.ne.s32.totalorder %s36, %s39
      %p45 = scmp.eq.s32.totalorder %s12, 0
      %p46 = por %p44, %p45
      %p47 = scmp.ne.s32.totalorder %s36, %s39
      %p48 = scmp.eq.s32.totalorder %s17, 1
      %p49 = por %p47, %p48
      %p50 = scmp.ne.s32.totalorder %s39, %s40
      %p51 = scmp.eq.s32.totalorder %s17, 0
      %p52 = por %p50, %p51
      %p53 = scmp.ne.s32.totalorder %s39, %s40
      %p54 = scmp.eq.s32.totalorder %s18, 1
      %p55 = por %p53, %p54
      %p57 = scmp.ne.s32.totalorder %s40, %s56
      %p58 = scmp.eq.s32.totalorder %s18, 0
      %p59 = por %p57, %p58
      %s61 = sadd.s32 %s60, 1
      %p64 = scmp.eq.s32.totalorder %s12, 1
      %p65 = scmp.ne.s32.totalorder %s60, %s62
      %p66 = scmp.eq.s32.totalorder %s12, 0
      %p67 = por %p65, %p66
      %p68 = scmp.ne.s32.totalorder %s60, %s62
      %p69 = scmp.eq.s32.totalorder %s17, 1
      %p70 = por %p68, %p69
      %p71 = scmp.ne.s32.totalorder %s62, %s63
      %p72 = scmp.eq.s32.totalorder %s17, 0
      %p73 = por %p71, %p72
      %p74 = scmp.ne.s32.totalorder %s62, %s63
      %p75 = scmp.eq.s32.totalorder %s18, 1
      %p76 = por %p74, %p75
      %p78 = scmp.ne.s32.totalorder %s63, %s77
      %p79 = scmp.eq.s32.totalorder %s18, 0
      %p80 = por %p78, %p79
      %s82 = sadd.s32 %s81, 1
      %p85 = scmp.eq.s32.totalorder %s12, 1
      %p86 = scmp.ne.s32.totalorder %s81, %s83
      %p87 = scmp.eq.s32.totalorder %s12, 0
      %p88 = por %p86, %p87
      %p89 = scmp.ne.s32.totalorder %s81, %s83
      %p90 = scmp.eq.s32.totalorder %s17, 1
      %p91 = por %p89, %p90
      %p92 = scmp.ne.s32.totalorder %s83, %s84
      %p93 = scmp.eq.s32.totalorder %s17, 0
      %p94 = por %p92, %p93
      %p95 = scmp.ne.s32.totalorder %s83, %s84
      %p96 = scmp.eq.s32.totalorder %s18, 1
      %p97 = por %p95, %p96
      %p99 = scmp.ne.s32.totalorder %s84, %s98
      %p100 = scmp.eq.s32.totalorder %s18, 0
      %p101 = por %p99, %p100
      %s102 = ssub.s32 %s19, %s31
      %s103 = ssub.s32 %s20, %s27
      %s104 = sor.u32 %s102, %s103
      %p105 = scmp.eq.s32.totalorder %s104, 0
      %s107 = sadd.s32 %s106, 1
      %s108 = scalar_select %p105, %s106, %s107
      %p111 = pneg %p105
      %p112 = scmp.eq.s32.totalorder %s12, 1
      %p113 = por %p111, %p112
      %p114 = scmp.ne.s32.totalorder %s106, %s109
      %p115 = scmp.eq.s32.totalorder %s12, 0
      %p116 = por %p114, %p115
      %p117 = scmp.ne.s32.totalorder %s106, %s109
      %p118 = scmp.eq.s32.totalorder %s17, 1
      %p119 = por %p117, %p118
      %p120 = scmp.ne.s32.totalorder %s109, %s110
      %p121 = scmp.eq.s32.totalorder %s17, 0
      %p122 = por %p120, %p121
      %p123 = scmp.ne.s32.totalorder %s109, %s110
      %p124 = scmp.eq.s32.totalorder %s18, 1
      %p125 = por %p123, %p124
      %p127 = scmp.ne.s32.totalorder %s110, %s126
      %p128 = scmp.eq.s32.totalorder %s18, 0
      %p129 = por %p127, %p128
      %p130 = scmp.le.s32.totalorder 1, %s12
      %p131 = scmp.lt.s32.totalorder %s12, 3
      %p132 = pnand %p130, %p131
      %p133 = pneg %p132
      // Predicated region
      $region9: #{tpu_custom_call.1} parent=5 // pred_check
        _
      $region10: #{tpu_custom_call.1} parent=5 // pred_check_branch
        %135 = sbr.rel (%p132) target = $region12
      $region11: #{tpu_custom_call.1} parent=5 // pred_region
        %s136 = ssub.s32 %s12, 1
        // Predicated region
        $region13: #{tpu_custom_call.1} parent=11 // pred_check
          %p137 = pneg %p73
        $region14: #{tpu_custom_call.1} parent=11 // pred_check_branch
          %139 = sbr.rel (%p137) target = $region16
        $region15: #{tpu_custom_call.1} parent=11 // pred_region
          _
        $region16: #{tpu_custom_call.1} parent=11 // pred_fallthru
          _
        // Predicated region
        $region17: #{tpu_custom_call.1} parent=11 // pred_check
          %p140 = pneg %p94
        $region18: #{tpu_custom_call.1} parent=11 // pred_check_branch
          %142 = sbr.rel (%p140) target = $region20
        $region19: #{tpu_custom_call.1} parent=11 // pred_region
          _
        $region20: #{tpu_custom_call.1} parent=11 // pred_fallthru
          _
      $region12: #{tpu_custom_call.1} parent=5 // pred_fallthru
        _
      %p143 = scmp.lt.s32.totalorder %s12, 2
      // Predicated region
      $region21: #{tpu_custom_call.1} parent=5 // pred_check
        %p144 = pneg %p143
      $region22: #{tpu_custom_call.1} parent=5 // pred_check_branch
        %146 = sbr.rel (%p144) target = $region24
      $region23: #{tpu_custom_call.1} parent=5 // pred_region
        // Predicated region
        $region25: #{tpu_custom_call.1} parent=23 // pred_check
          %p147 = pneg %p46
        $region26: #{tpu_custom_call.1} parent=23 // pred_check_branch
          %149 = sbr.rel (%p147) target = $region28
        $region27: #{tpu_custom_call.1} parent=23 // pred_region
          %p150 = scmp.lt.s32.totalorder %s19, 1
          %s151 = scalar_select %p150, %s19, 1
          %p152 = scmp.lt.s32.totalorder %s20, 0
          %s153 = scalar_select %p152, %s20, 0
          %s154 = smul.addr %s153, 3
          %s155 = smul.addr %s151, 3
          %s156 = sadd.s32 %s154, %s155
          %s157 = smul.addr %s156, 4
          %s158 = scalar_lea.vmem %s0, %s157
        $region28: #{tpu_custom_call.1} parent=23 // pred_fallthru
          _
      $region24: #{tpu_custom_call.1} parent=5 // pred_fallthru
        _
      %p159 = scmp.le.s32.totalorder 1, %s12
      %p160 = scmp.lt.s32.totalorder %s12, 3
      %p161 = pnand %p159, %p160
      %p162 = pneg %p161
      // Predicated region
      $region29: #{tpu_custom_call.1} parent=5 // pred_check
        _
      $region30: #{tpu_custom_call.1} parent=5 // pred_check_branch
        %164 = sbr.rel (%p161) target = $region32
      $region31: #{tpu_custom_call.1} parent=5 // pred_region
        %s165 = ssub.s32 %s12, 1
        %p166 = scmp.lt.s32.totalorder %s21, 1
        %s167 = scalar_select %p166, %s21, 1
        %p168 = scmp.lt.s32.totalorder %s22, 0
        %s169 = scalar_select %p168, %s22, 0
        %s170 = smul.addr %s169, 3
        %s171 = smul.addr %s167, 3
        %s172 = sadd.s32 %s170, %s171
        %s173 = smul.addr %s172, 4
        %s174 = scalar_lea.vmem %s0, %s173
        %p175 = pneg %p52
        %p176 = pneg %p49
        %p177 = pneg %p73
        %p178 = pneg %p70
        %p179 = pneg %p94
        %p180 = pneg %p91
        %p181 = pneg %p122
        %p182 = pneg %p119
        %s183 = sand.u32 %s109, 1
        %s184 = scalar_lea.sflag [#allocation3], %s183
        %s185 = sand.u32 %s109, 1
        %s186 = smul.addr %s185, 16
        %s187 = scalar_lea.vmem [#allocation2], %s186
        %p188 = scmp.lt.s32.totalorder %s21, 1
        %s189 = scalar_select %p188, %s21, 1
        %p190 = scmp.lt.s32.totalorder %s22, 0
        %s191 = scalar_select %p190, %s22, 0
        %s192 = smul.addr %s191, 3
        %s193 = smul.addr %s189, 3
        %s194 = sadd.s32 %s192, %s193
        %s195 = smul.addr %s194, 4
        %s196 = scalar_lea.vmem %s0, %s195
        %s197 = smul.u32 2, %s22
        %v198 = vld [vmem:[%s1] sm:$0xf]
        %s199 = scalar_lea.vmem %s1, 4
        %v200 = vld [vmem:[%s199] sm:$0xf]
        %s201 = scalar_lea.vmem %s1, 8
        %v202 = vld [vmem:[%s201] sm:$0xf]
        %s203 = scalar_lea.vmem %s1, 12
        %v204 = vld [vmem:[%s203] sm:$0xf]
        %s205 = scalar_lea.vmem %s1, 16
        %v206 = vld [vmem:[%s205] sm:$0xf]
        %s207 = scalar_lea.vmem %s1, 20
        %v208 = vld [vmem:[%s207] sm:$0xf]
        %s209 = scalar_lea.vmem %s1, 24
        %v210 = vld [vmem:[%s209] sm:$0xf]
        %s211 = scalar_lea.vmem %s1, 28
        %v212 = vld [vmem:[%s211] sm:$0xf]
        %s213 = scalar_lea.vmem %s1, 32
        %v214 = vld [vmem:[%s213] sm:$0xf]
        %v215 = vld [vmem:[%s2] sm:$0xff]
        %v216 = vlaneseq
        %v217 = vand.u32 %v216, 127
        %v218 = vadd.s32 %v217, 128
        %vm219 = vcmp.lt.s32.totalorder %v217, 0
        %v220 = vsub.s32 0, %v217
        %v221 = vsel %vm219, %v220, %v217
        %v222 = vshrl.u32 %v221, 4
        %v223 = vand.u32 %v221, 15
        %v224 = vsub.s32 0, %v223
        %v225 = vsel %vm219, %v224, %v223
        %vm226 = vcmp.lt.s32.totalorder %v218, 0
        %v227 = vsub.s32 0, %v218
        %v228 = vsel %vm226, %v227, %v218
        %v229 = vshrl.u32 %v228, 4
        %v230 = vand.u32 %v228, 15
        %v231 = vsub.s32 0, %v230
        %v232 = vsel %vm226, %v231, %v230
        %vm233 = vcmp.ne.s32.totalorder %v225, 0
        %vm234 = vcmp.ne.s32.totalorder %v232, 0
        %vm235 = vcmp.lt.s32.totalorder %v225, 0
        %vm236 = vcmp.lt.s32.totalorder %v232, 0
        %vm237 = vmand %vm235, %vm233
        %vm238 = vmand %vm236, %vm234
        %v239 = vadd.s32 %v225, 16
        %v240 = vadd.s32 %v232, 16
        %v241 = vsel %vm237, %v239, %v225
        %v242 = vsel %vm238, %v240, %v232
        %v243 = vadd.s32 %v241, 4294967295
        %v244 = vadd.s32 %v242, 4294967295
        %vm245 = vcmp.ge.s32.totalorder %v243, 0
        %vm246 = vcmp.ge.s32.totalorder %v244, 0
        %vm247 = vcmp.lt.s32.totalorder %v243, 16
        %vm248 = vcmp.lt.s32.totalorder %v244, 16
        %vm249 = vmand %vm245, %vm247
        %vm250 = vmand %vm246, %vm248
        %v251 = vadd.s32 %v241, 1
        %v252 = vadd.s32 %v242, 1
        %vm253 = vcmp.ge.s32.totalorder %v251, 0
        %vm254 = vcmp.ge.s32.totalorder %v252, 0
        %vm255 = vcmp.lt.s32.totalorder %v251, 16
        %vm256 = vcmp.lt.s32.totalorder %v252, 16
        %vm257 = vmand %vm253, %vm255
        %vm258 = vmand %vm254, %vm256
        %v259 = vld [vmem:[%s196] sm:$0xff]
        %261 = vset.pattern.permute.xlu0 0
        %262 = vperm.xlu0 %261, %v198
        %v263 = vpop.permute.xlu0 %262
        %v265 = vunpack.c.l.s4 839922192
        %v266 = vunpack.c.0.s8 %v265
        %v267 = vlaneseq
        %v268 = vshrl.u32 %v267, 7
        %v269 = vsub.s32 %v266, %v268
        %v270 = vrot.slane %v263, %v269
        %v272 = vmul.f32 %v259, %v270
        %v273 = vld [vmem:[%s196] sm:$0xff]
        %v274 = vld [vmem:[%s196 + $0x8] sm:$0xf]
        %276 = vset.pattern.permute.xlu0 0
        %277 = vperm.xlu0 %276, %v204
        %v278 = vpop.permute.xlu0 %277
        %v280 = vunpack.c.l.s4 839922192
        %v281 = vunpack.c.0.s8 %v280
        %v282 = vlaneseq
        %v283 = vshrl.u32 %v282, 7
        %v284 = vsub.s32 %v281, %v283
        %v285 = vrot.slane %v278, %v284
        %v287 = vmul.f32 %v273, %v285
        %v288 = vmul.f32 %v274, %v285
        %291 = vrot.lane.b32.xlu0 %v287, 112
        %v292 = vpop.permute.xlu0 %291
        %293 = vrot.lane.b32.xlu0 %v288, 112
        %v294 = vpop.permute.xlu0 %293
        %v295 = vrot.slane %v292, 4
        %v296 = vrot.slane %v294, 4
        %vm297 = vcmask 1043456
        %v298 = vsel %vm297, %v295, %v296
        %vm299 = vcmask 916480
        %v300 = vsel %vm299, %v292, %v298
        %v302 = vadd.f32 %v272, %v300
        %304 = vset.pattern.permute.xlu0 0
        %305 = vperm.xlu0 %304, %v210
        %v306 = vpop.permute.xlu0 %305
        %v308 = vunpack.c.l.s4 839922192
        %v309 = vunpack.c.0.s8 %v308
        %v310 = vlaneseq
        %v311 = vshrl.u32 %v310, 7
        %v312 = vsub.s32 %v309, %v311
        %v313 = vrot.slane %v306, %v312
        %v315 = vmul.f32 %v273, %v313
        %v316 = vmul.f32 %v274, %v313
        %319 = vrot.lane.b32.xlu0 %v315, 96
        %v320 = vpop.permute.xlu0 %319
        %321 = vrot.lane.b32.xlu0 %v316, 96
        %v322 = vpop.permute.xlu0 %321
        %v323 = vrot.slane %v320, 4
        %v324 = vrot.slane %v322, 4
        %v325 = vsel %vm297, %v323, %v324
        %vm326 = vcmask 785408
        %v327 = vsel %vm326, %v320, %v325
        %v329 = vadd.f32 %v302, %v327
        %v330 = vsel %vm249, 1, 0
        %v331 = vsel %vm250, 1, 0
        %vm332 = vcmp.eq.s32.totalorder %v330, 1
        %vm333 = vcmp.eq.s32.totalorder %v331, 1
        %v335 = vcombine.high %v329, %v329
        %v337 = vsel %vm332, %v329, 0.0
        %v338 = vsel %vm333, %v335, 0.0
        %v339 = vld [vmem:[%s196] sm:$0xff]
        %v340 = vld [vmem:[%s196 + $0x8] sm:$0xf]
        %342 = vset.pattern.permute.xlu0 0
        %343 = vperm.xlu0 %342, %v200
        %v344 = vpop.permute.xlu0 %343
        %v346 = vunpack.c.l.s4 839922192
        %v347 = vunpack.c.0.s8 %v346
        %v348 = vlaneseq
        %v349 = vshrl.u32 %v348, 7
        %v350 = vsub.s32 %v347, %v349
        %v351 = vrot.slane %v344, %v350
        %v353 = vmul.f32 %v339, %v351
        %v354 = vmul.f32 %v340, %v351
        %356 = vset.pattern.permute.xlu0 0
        %357 = vperm.xlu0 %356, %v206
        %v358 = vpop.permute.xlu0 %357
        %v360 = vunpack.c.l.s4 839922192
        %v361 = vunpack.c.0.s8 %v360
        %v362 = vlaneseq
        %v363 = vshrl.u32 %v362, 7
        %v364 = vsub.s32 %v361, %v363
        %v365 = vrot.slane %v358, %v364
        %v367 = vmul.f32 %v339, %v365
        %v368 = vmul.f32 %v340, %v365
        %371 = vrot.lane.b32.xlu0 %v367, 112
        %v372 = vpop.permute.xlu0 %371
        %373 = vrot.lane.b32.xlu0 %v368, 112
        %v374 = vpop.permute.xlu0 %373
        %v375 = vrot.slane %v372, 4
        %v376 = vrot.slane %v374, 4
        %v377 = vsel %vm297, %v375, %v376
        %v378 = vsel %vm299, %v372, %v377
        %v381 = vadd.f32 %v353, %v378
        %v382 = vadd.f32 %v354, %v374
        %384 = vset.pattern.permute.xlu0 0
        %385 = vperm.xlu0 %384, %v212
        %v386 = vpop.permute.xlu0 %385
        %v388 = vunpack.c.l.s4 839922192
        %v389 = vunpack.c.0.s8 %v388
        %v390 = vlaneseq
        %v391 = vshrl.u32 %v390, 7
        %v392 = vsub.s32 %v389, %v391
        %v393 = vrot.slane %v386, %v392
        %v395 = vmul.f32 %v339, %v393
        %v396 = vmul.f32 %v340, %v393
        %399 = vrot.lane.b32.xlu0 %v395, 96
        %v400 = vpop.permute.xlu0 %399
        %401 = vrot.lane.b32.xlu0 %v396, 96
        %v402 = vpop.permute.xlu0 %401
        %v403 = vrot.slane %v400, 4
        %v404 = vrot.slane %v402, 4
        %v405 = vsel %vm297, %v403, %v404
        %v406 = vsel %vm326, %v400, %v405
        %v409 = vadd.f32 %v381, %v406
        %v410 = vadd.f32 %v382, %v402
        %v413 = vcombine.high %v409, %v409
        %414 = vrot.lane.b32.xlu0 %v409, 127
        %v415 = vpop.permute.xlu0 %414
        %416 = vrot.lane.b32.xlu0 %v413, 127
        %v417 = vpop.permute.xlu0 %416
        %418 = vrot.lane.b32.xlu0 %v410, 127
        %v419 = vpop.permute.xlu0 %418
        %vm420 = vcmask 1039360
        %v421 = vsel %vm420, %v415, %v417
        %v422 = vsel %vm420, %v417, %v419
        %v425 = vadd.f32 %v337, %v421
        %v426 = vadd.f32 %v338, %v422
        %v427 = vld [vmem:[%s196] sm:$0xff]
        %v428 = vld [vmem:[%s196 + $0x8] sm:$0xf]
        %430 = vset.pattern.permute.xlu0 0
        %431 = vperm.xlu0 %430, %v202
        %v432 = vpop.permute.xlu0 %431
        %v434 = vunpack.c.l.s4 839922192
        %v435 = vunpack.c.0.s8 %v434
        %v436 = vlaneseq
        %v437 = vshrl.u32 %v436, 7
        %v438 = vsub.s32 %v435, %v437
        %v439 = vrot.slane %v432, %v438
        %v441 = vmul.f32 %v427, %v439
        %v442 = vmul.f32 %v428, %v439
        %444 = vset.pattern.permute.xlu0 0
        %445 = vperm.xlu0 %444, %v208
        %v446 = vpop.permute.xlu0 %445
        %v448 = vunpack.c.l.s4 839922192
        %v449 = vunpack.c.0.s8 %v448
        %v450 = vlaneseq
        %v451 = vshrl.u32 %v450, 7
        %v452 = vsub.s32 %v449, %v451
        %v453 = vrot.slane %v446, %v452
        %v455 = vmul.f32 %v427, %v453
        %v456 = vmul.f32 %v428, %v453
        %459 = vrot.lane.b32.xlu0 %v455, 112
        %v460 = vpop.permute.xlu0 %459
        %461 = vrot.lane.b32.xlu0 %v456, 112
        %v462 = vpop.permute.xlu0 %461
        %v463 = vrot.slane %v460, 4
        %v464 = vrot.slane %v462, 4
        %v465 = vsel %vm297, %v463, %v464
        %v466 = vsel %vm299, %v460, %v465
        %v469 = vadd.f32 %v441, %v466
        %v470 = vadd.f32 %v442, %v462
        %472 = vset.pattern.permute.xlu0 0
        %473 = vperm.xlu0 %472, %v214
        %v474 = vpop.permute.xlu0 %473
        %v476 = vunpack.c.l.s4 839922192
        %v477 = vunpack.c.0.s8 %v476
        %v478 = vlaneseq
        %v479 = vshrl.u32 %v478, 7
        %v480 = vsub.s32 %v477, %v479
        %v481 = vrot.slane %v474, %v480
        %v483 = vmul.f32 %v427, %v481
        %v484 = vmul.f32 %v428, %v481
        %487 = vrot.lane.b32.xlu0 %v483, 96
        %v488 = vpop.permute.xlu0 %487
        %489 = vrot.lane.b32.xlu0 %v484, 96
        %v490 = vpop.permute.xlu0 %489
        %v491 = vrot.slane %v488, 4
        %v492 = vrot.slane %v490, 4
        %v493 = vsel %vm297, %v491, %v492
        %v494 = vsel %vm326, %v488, %v493
        %v497 = vadd.f32 %v469, %v494
        %v498 = vadd.f32 %v470, %v490
        %v499 = vsel %vm257, 1, 0
        %v500 = vsel %vm258, 1, 0
        %vm501 = vcmp.eq.s32.totalorder %v499, 1
        %vm502 = vcmp.eq.s32.totalorder %v500, 1
        %v505 = vcombine.high %v497, %v497
        %506 = vrot.lane.b32.xlu0 %v497, 126
        %v507 = vpop.permute.xlu0 %506
        %508 = vrot.lane.b32.xlu0 %v505, 126
        %v509 = vpop.permute.xlu0 %508
        %510 = vrot.lane.b32.xlu0 %v498, 126
        %v511 = vpop.permute.xlu0 %510
        %vm512 = vcmask 1031168
        %v513 = vsel %vm512, %v507, %v509
        %v514 = vsel %vm512, %v509, %v511
        %v517 = vsel %vm501, %v513, 0.0
        %v518 = vsel %vm502, %v514, 0.0
        %v519 = vadd.f32 %v425, %v517
        %v520 = vadd.f32 %v426, %v518
        %vm521 = vcmask 31744
        %v523 = vsel %vm521, %v215, 0
        %v526 = vsel %vm297, %v519, 0
        %v529 = vsel %vm297, %v520, 0
        %531 = vmatprep.subr.mxu0 %v529
        %532 = vmatpush1.msra.mxu0 %v526
        %533 = vmatprep.subr.mxu0 0.0
        %534 = vmatpush1.msra.mxu0 0.0
        %535 = vmatprep.subr.mxu0 0.0
        %536 = vmatpush1.msra.mxu0 0.0
        %537 = vmatprep.subr.mxu0 0.0
        %538 = vmatpush1.msra.mxu0 0.0
        %539 = vmatprep.subr.mxu0 0.0
        %540 = vmatpush1.msra.mxu0 0.0
        %541 = vmatprep.subr.mxu0 0.0
        %542 = vmatpush1.msra.mxu0 0.0
        %543 = vmatprep.subr.mxu0 0.0
        %544 = vmatpush1.msra.mxu0 0.0
        %545 = vmatprep.subr.mxu0 0.0
        %546 = vmatpush1.msra.mxu0 0.0
        %547 = vmatprep.subr.mxu0 0.0
        %548 = vmatpush1.msra.mxu0 0.0
        %549 = vmatprep.subr.mxu0 0.0
        %550 = vmatpush1.msra.mxu0 0.0
        %551 = vmatprep.subr.mxu0 0.0
        %552 = vmatpush1.msra.mxu0 0.0
        %553 = vmatprep.subr.mxu0 0.0
        %554 = vmatpush1.msra.mxu0 0.0
        %555 = vmatprep.subr.mxu0 0.0
        %556 = vmatpush1.msra.mxu0 0.0
        %557 = vmatprep.subr.mxu0 0.0
        %558 = vmatpush1.msra.mxu0 0.0
        %559 = vmatprep.subr.mxu0 0.0
        %560 = vmatpush1.msra.mxu0 0.0
        %561 = vmatprep.subr.mxu0 0.0
        %562 = vmatpush1.msra.mxu0 0.0
        %563 = vmatprep.subr.mxu0 0.0
        %564 = vmatpush1.msra.mxu0 0.0
        %565 = vmatprep.subr.mxu0 0.0
        %566 = vmatpush1.msra.mxu0 0.0
        %567 = vmatprep.subr.mxu0 0.0
        %568 = vmatpush1.msra.mxu0 0.0
        %569 = vmatprep.subr.mxu0 0.0
        %570 = vmatpush1.msra.mxu0 0.0
        %571 = vmatprep.subr.mxu0 0.0
        %572 = vmatpush1.msra.mxu0 0.0
        %573 = vmatprep.subr.mxu0 0.0
        %574 = vmatpush1.msra.mxu0 0.0
        %575 = vmatprep.subr.mxu0 0.0
        %576 = vmatpush1.msra.mxu0 0.0
        %577 = vmatprep.subr.mxu0 0.0
        %578 = vmatpush1.msra.mxu0 0.0
        %579 = vmatprep.subr.mxu0 0.0
        %580 = vmatpush1.msra.mxu0 0.0
        %581 = vmatprep.subr.mxu0 0.0
        %582 = vmatpush1.msra.mxu0 0.0
        %583 = vmatprep.subr.mxu0 0.0
        %584 = vmatpush1.msra.mxu0 0.0
        %585 = vmatprep.subr.mxu0 0.0
        %586 = vmatpush1.msra.mxu0 0.0
        %587 = vmatprep.subr.mxu0 0.0
        %588 = vmatpush1.msra.mxu0 0.0
        %589 = vmatprep.subr.mxu0 0.0
        %590 = vmatpush1.msra.mxu0 0.0
        %591 = vmatprep.subr.mxu0 0.0
        %592 = vmatpush1.msra.mxu0 0.0
        %593 = vmatprep.subr.mxu0 0.0
        %594 = vmatpush1.msra.mxu0 0.0
        %595 = vmatprep.mubr.f32.mxu0 0.0
        %596 = vmatmul.mubr.f32.gmra.mrb[0].mxu0 %v523
        %v597 = vpop.f32.mrb[0].mxu0
        %v598 = vadd.f32 0.0, %v597
        %v599 = vpop.f32.mrb[0].mxu0
        %v600 = vadd.f32 0.0, %v599
        %601 = vdwg.mxu0
        %602 = vst [vmem:[%s187] sm:$0xff] %v598
        %603 = vst [vmem:[%s187 + $0x8] sm:$0xff] %v600
        %s604 = sand.u32 %s109, 1
        %s605 = scalar_lea.sflag [#allocation3], %s604
        %s606 = sand.u32 %s109, 1
        %s607 = smul.addr %s606, 16
        %s608 = scalar_lea.vmem [#allocation2], %s607
        // Predicated region
        $region33: #{tpu_custom_call.1} parent=31 // pred_check
          %p609 = pneg %p119
        $region34: #{tpu_custom_call.1} parent=31 // pred_check_branch
          %611 = sbr.rel (%p609) target = $region36
        $region35: #{tpu_custom_call.1} parent=31 // pred_region
          %s612 = smul.u32 2, %s22
          %s614 = ssub.s32 256, 256
          %615 = vsyncadd %s605, %s614
          %s616 = smul.addr %s21, 2
          %s617 = sadd.s32 %s612, %s616
          %s618 = smul.addr %s617, 128
          %s619 = scalar_lea.hbm %s3, %s618
          %s621 = sshll.u32 %s608, 4
          %s622 = int_to_ptr.vmem [resolvable:$true] %s621
          %624 = dma.vmem_to_hbm [thread:$0]  %s622, 256, %s619, %s605
        $region36: #{tpu_custom_call.1} parent=31 // pred_fallthru
          _
      $region32: #{tpu_custom_call.1} parent=5 // pred_fallthru
        _
      %p625 = scmp.le.s32.totalorder 2, %s12
      // Predicated region
      $region37: #{tpu_custom_call.1} parent=5 // pred_check
        %p626 = pneg %p625
      $region38: #{tpu_custom_call.1} parent=5 // pred_check_branch
        %628 = sbr.rel (%p626) target = $region40
      $region39: #{tpu_custom_call.1} parent=5 // pred_region
        %s629 = ssub.s32 %s12, 2
        // Predicated region
        $region41: #{tpu_custom_call.1} parent=39 // pred_check
          %p630 = pneg %p125
        $region42: #{tpu_custom_call.1} parent=39 // pred_check_branch
          %632 = sbr.rel (%p630) target = $region44
        $region43: #{tpu_custom_call.1} parent=39 // pred_region
          %s633 = sand.u32 %s110, 1
          %s634 = scalar_lea.sflag [#allocation3], %s633
          %s635 = sand.u32 %s110, 1
          %s636 = smul.addr %s635, 16
          %s637 = scalar_lea.vmem [#allocation2], %s636
          %638 = dma.done %s634, 256
        $region44: #{tpu_custom_call.1} parent=39 // pred_fallthru
          _
      $region40: #{tpu_custom_call.1} parent=5 // pred_fallthru
        _
    $region6: #{tpu_custom_call.1} parent=1 // loop_footer
      %s16 = sadd.s32 1, %s12
    $region7: #{tpu_custom_call.1} parent=1 // loop_footer_branch
      %11 = sbr.rel target = $region3
    $region8: #{tpu_custom_call.1} parent=1 // loop_exit
      _
    %639 = vsyncpa [#allocation3], 1
    %s640 = scalar_lea.sflag [#allocation3], 1
    %641 = vsyncpa %s640, 1

</llo_original>
